<compile_context>
chip_gen: v5e
topology: v5e:2x2
jax: 0.10.0
libtpu: 0.0.40
codegen_flags: <defaults>
</compile_context>

<pallas_src>
import functools

import jax
import jax.numpy as jnp
from jax.experimental import pallas as pl
from jax.experimental.pallas import tpu as pltpu


# ----------------------------------------------------------------------------
# One-time parameter packing (hoisted out of the hot path).
# cat([x, h]) @ W.T == x @ Wx.T + h @ Wh.T, so each Linear weight is split and
# pre-transposed to [K, N]; i2h and i2o are fused along N (= hidden + output).
# ----------------------------------------------------------------------------
def pack_params(params, input_size):
    wih, bih = params["i2h_w"], params["i2h_b"]
    wio, bio = params["i2o_w"], params["i2o_b"]
    wx = jnp.concatenate([wih[:, :input_size].T, wio[:, :input_size].T], axis=1)
    wh = jnp.concatenate([wih[:, input_size:].T, wio[:, input_size:].T], axis=1)
    b = jnp.concatenate([bih, bio]).reshape(1, -1)
    return {"wx": wx, "wh": wh, "b": b}   # [in,N], [hid,N], [1,N]


def _log_softmax(logits):
    m = jnp.max(logits, axis=-1, keepdims=True)
    shifted = logits - m
    lse = jnp.log(jnp.sum(jnp.exp(shifted), axis=-1, keepdims=True))
    return shifted - lse


# ----------------------------------------------------------------------------
# Single-step kernel (module-faithful forward).
# ----------------------------------------------------------------------------
def _rnn_step_kernel(hidden_size, x_ref, h_ref, wx_ref, wh_ref, b_ref,
                     out_ref, newh_ref):
    x = x_ref[...].astype(jnp.float32)
    h = h_ref[...].astype(jnp.float32)
    fused = (jnp.dot(x, wx_ref[...], preferred_element_type=jnp.float32)
             + jnp.dot(h, wh_ref[...], preferred_element_type=jnp.float32)
             + b_ref[...])                                  # [B, hid+out]
    new_h = fused[:, :hidden_size]
    log_p = _log_softmax(fused[:, hidden_size:])
    out_ref[...] = log_p.astype(out_ref.dtype)
    newh_ref[...] = new_h.astype(newh_ref.dtype)


def rnn_forward(x, h, packed, hidden_size):
    """One RNN step: x [B,in], h [B,hid] -> (log_probs [B,out], new_h [B,hid])."""
    B = x.shape[0]
    N = packed["wx"].shape[1]
    output_size = N - hidden_size
    vmem = lambda: pl.BlockSpec(memory_space=pltpu.MemorySpace.VMEM)
    out, new_h = pl.pallas_call(
        functools.partial(_rnn_step_kernel, hidden_size),
        out_shape=(
            jax.ShapeDtypeStruct((B, output_size), x.dtype),
            jax.ShapeDtypeStruct((B, hidden_size), x.dtype),
        ),
        in_specs=[vmem() for _ in range(5)],
        out_specs=(vmem(), vmem()),
    )(x, h, packed["wx"], packed["wh"], packed["b"])
    return out, new_h


# ----------------------------------------------------------------------------
# Full-sequence kernel: time loop inside the kernel, weights resident in VMEM,
# hidden state carried in a VMEM scratch.
# ----------------------------------------------------------------------------
def _rnn_seq_kernel(hidden_size, return_all, x_ref, h0_ref, wx_ref, wh_ref,
                    b_ref, out_ref, hT_ref, h_scratch):
    t = pl.program_id(0)
    T = pl.num_programs(0)

    @pl.when(t == 0)
    def _():
        h_scratch[...] = h0_ref[...].astype(jnp.float32)

    x = x_ref[0].astype(jnp.float32)       # [B, in]
    h = h_scratch[...]                     # [B, hid]

    fused = (jnp.dot(x, wx_ref[...], preferred_element_type=jnp.float32)
             + jnp.dot(h, wh_ref[...], preferred_element_type=jnp.float32)
             + b_ref[...])                 # [B, hid+out]
    new_h = fused[:, :hidden_size]
    h_scratch[...] = new_h

    if return_all:
        out_ref[0] = _log_softmax(fused[:, hidden_size:]).astype(out_ref.dtype)
    else:
        @pl.when(t == T - 1)
        def _():
            out_ref[...] = _log_softmax(fused[:, hidden_size:]).astype(out_ref.dtype)

    @pl.when(t == T - 1)
    def _():
        hT_ref[...] = new_h.astype(hT_ref.dtype)


def rnn_forward_sequence(x_seq, h0, packed, hidden_size, return_all_outputs=True):
    """x_seq [T,B,in], h0 [B,hid] -> (log_probs [T,B,out] or [B,out], h_T [B,hid])."""
    T, B, input_size = x_seq.shape
    N = packed["wx"].shape[1]
    output_size = N - hidden_size

    if return_all_outputs:
        out_shape0 = jax.ShapeDtypeStruct((T, B, output_size), x_seq.dtype)
        out_spec0 = pl.BlockSpec((1, B, output_size), lambda t: (t, 0, 0))
    else:
        out_shape0 = jax.ShapeDtypeStruct((B, output_size), x_seq.dtype)
        out_spec0 = pl.BlockSpec((B, output_size), lambda t: (0, 0))

    out, hT = pl.pallas_call(
        functools.partial(_rnn_seq_kernel, hidden_size, return_all_outputs),
        out_shape=(out_shape0, jax.ShapeDtypeStruct((B, hidden_size), x_seq.dtype)),
        grid_spec=pltpu.PrefetchScalarGridSpec(
            num_scalar_prefetch=0,
            grid=(T,),
            in_specs=[
                pl.BlockSpec((1, B, input_size), lambda t: (t, 0, 0)),  # x_t streamed
                pl.BlockSpec((B, hidden_size), lambda t: (0, 0)),       # h0 (resident)
                pl.BlockSpec(packed["wx"].shape, lambda t: (0, 0)),     # resident weights
                pl.BlockSpec(packed["wh"].shape, lambda t: (0, 0)),
                pl.BlockSpec(packed["b"].shape, lambda t: (0, 0)),
            ],
            out_specs=(
                out_spec0,
                pl.BlockSpec((B, hidden_size), lambda t: (0, 0)),       # final hidden
            ),
            scratch_shapes=[pltpu.VMEM((B, hidden_size), jnp.float32)],
        ),
        compiler_params=pltpu.CompilerParams(
            dimension_semantics=("arbitrary",),
        ),
    )(x_seq, h0, packed["wx"], packed["wh"], packed["b"])
    return out, hT


def init_params(key, input_size, hidden_size, output_size):
    k1, k2, k3, k4 = jax.random.split(key, 4)
    comb = input_size + hidden_size
    bound = 1.0 / jnp.sqrt(comb)
    return {
        "i2h_w": jax.random.uniform(k1, (hidden_size, comb), jnp.float32, -bound, bound),
        "i2h_b": jax.random.uniform(k2, (hidden_size,), jnp.float32, -bound, bound),
        "i2o_w": jax.random.uniform(k3, (output_size, comb), jnp.float32, -bound, bound),
        "i2o_b": jax.random.uniform(k4, (output_size,), jnp.float32, -bound, bound),
    }


if __name__ == "__main__":
    input_size, hidden_size, output_size = 16, 32, 8
    batch, seq_len = 8, 12

    key = jax.random.PRNGKey(0)
    kp, kx = jax.random.split(key, 2)
    params = init_params(kp, input_size, hidden_size, output_size)
    packed = pack_params(params, input_size)

    x_seq = jax.random.normal(kx, (seq_len, batch, input_size), jnp.float32)
    h0 = jnp.zeros((batch, hidden_size), jnp.float32)   # init_hidden (broadcast to batch)

    # Pure-JAX reference step.
    def ref_step(x, h):
        combined = jnp.concatenate([x, h], axis=1)
        rh = combined @ params["i2h_w"].T + params["i2h_b"]
        logits = combined @ params["i2o_w"].T + params["i2o_b"]
        return jax.nn.log_softmax(logits, axis=1), rh

    # --- single step (module-faithful forward) ---
    step_fn = jax.jit(functools.partial(rnn_forward, hidden_size=hidden_size))
    log_p, new_h = step_fn(x_seq[0], h0, packed)
    jax.block_until_ready((log_p, new_h))
    r_out, r_h = ref_step(x_seq[0], h0)
    assert jnp.allclose(log_p, r_out, atol=1e-4), "step log_softmax mismatch"
    assert jnp.allclose(new_h, r_h, atol=1e-4), "step hidden mismatch"

    # --- full sequence, time loop inside the kernel ---
    seq_fn = jax.jit(functools.partial(
        rnn_forward_sequence, hidden_size=hidden_size, return_all_outputs=True))
    out_seq, hT = seq_fn(x_seq, h0, packed)
    jax.block_until_ready((out_seq, hT))

    last_fn = jax.jit(functools.partial(
        rnn_forward_sequence, hidden_size=hidden_size, return_all_outputs=False))
    out_last, hT2 = last_fn(x_seq, h0, packed)
    jax.block_until_ready((out_last, hT2))

    # Reference recurrence.
    ref_outs, h = [], h0
    for t in range(seq_len):
        o, h = ref_step(x_seq[t], h)
        ref_outs.append(o)
    ref_outs = jnp.stack(ref_outs)

    assert jnp.allclose(out_seq, ref_outs, rtol=1e-3, atol=1e-3), "sequence log-probs mismatch"
    assert jnp.allclose(hT, h, rtol=1e-3, atol=1e-3), "final hidden mismatch"
    assert jnp.allclose(out_last, ref_outs[-1], rtol=1e-3, atol=1e-3), "last-output mismatch"
    assert jnp.allclose(hT2, h, rtol=1e-3, atol=1e-3), "final hidden (last-only) mismatch"

    print("KERNEL_OK")
</pallas_src>

<mosaic_0001>
module attributes {stable_mosaic.version = 11 : i64} {
  func.func @_rnn_step_kernel(%arg0: memref<8x16xf32, #tpu.memory_space<vmem>>, %arg1: memref<8x32xf32, #tpu.memory_space<vmem>>, %arg2: memref<16x40xf32, #tpu.memory_space<vmem>>, %arg3: memref<32x40xf32, #tpu.memory_space<vmem>>, %arg4: memref<1x40xf32, #tpu.memory_space<vmem>>, %arg5: memref<8x8xf32, #tpu.memory_space<vmem>>, %arg6: memref<8x32xf32, #tpu.memory_space<vmem>>) attributes {dimension_semantics = [], scalar_prefetch = 0 : i64, scratch_operands = 0 : i64, tpu.core_type = #tpu.core_type<tc>} {
    %c0 = arith.constant 0 : index
    %c0_0 = arith.constant 0 : index
    %0 = vector.load %arg0[%c0, %c0_0] : memref<8x16xf32, #tpu.memory_space<vmem>>, vector<8x16xf32>
    %c0_1 = arith.constant 0 : index
    %c0_2 = arith.constant 0 : index
    %1 = vector.load %arg1[%c0_1, %c0_2] : memref<8x32xf32, #tpu.memory_space<vmem>>, vector<8x32xf32>
    %c0_3 = arith.constant 0 : index
    %c0_4 = arith.constant 0 : index
    %2 = vector.load %arg2[%c0_3, %c0_4] : memref<16x40xf32, #tpu.memory_space<vmem>>, vector<16x40xf32>
    %cst = arith.constant dense<0.000000e+00> : vector<8x40xf32>
    %3 = tpu.matmul %0, %2, %cst {dimension_numbers = #tpu.dot_dimension_numbers<[1], [0], [0], [1], [0, 0, 1, 1], [], []>} : vector<8x16xf32>, vector<16x40xf32>, vector<8x40xf32> -> vector<8x40xf32>
    %c0_5 = arith.constant 0 : index
    %c0_6 = arith.constant 0 : index
    %4 = vector.load %arg3[%c0_5, %c0_6] : memref<32x40xf32, #tpu.memory_space<vmem>>, vector<32x40xf32>
    %cst_7 = arith.constant dense<0.000000e+00> : vector<8x40xf32>
    %5 = tpu.matmul %1, %4, %cst_7 {dimension_numbers = #tpu.dot_dimension_numbers<[1], [0], [0], [1], [0, 0, 1, 1], [], []>} : vector<8x32xf32>, vector<32x40xf32>, vector<8x40xf32> -> vector<8x40xf32>
    %6 = arith.addf %3, %5 : vector<8x40xf32>
    %c0_8 = arith.constant 0 : index
    %c0_9 = arith.constant 0 : index
    %7 = vector.load %arg4[%c0_8, %c0_9] : memref<1x40xf32, #tpu.memory_space<vmem>>, vector<1x40xf32>
    %8 = vector.broadcast %7 : vector<1x40xf32> to vector<8x40xf32>
    %9 = arith.addf %6, %8 : vector<8x40xf32>
    %10 = vector.extract_strided_slice %9 {offsets = [0, 0], sizes = [8, 32], strides = [1, 1]} : vector<8x40xf32> to vector<8x32xf32>
    %11 = vector.extract_strided_slice %9 {offsets = [0, 32], sizes = [8, 8], strides = [1, 1]} : vector<8x40xf32> to vector<8x8xf32>
    %cst_10 = arith.constant dense<0xFF800000> : vector<8xf32>
    %12 = vector.multi_reduction <maximumf>, %11, %cst_10 [1] : vector<8x8xf32> to vector<8xf32>
    %13 = vector.shape_cast %12 : vector<8xf32> to vector<8x1xf32>
    %14 = vector.broadcast %13 : vector<8x1xf32> to vector<8x8xf32>
    %15 = arith.subf %11, %14 : vector<8x8xf32>
    %16 = math.exp %15 : vector<8x8xf32>
    %cst_11 = arith.constant dense<0.000000e+00> : vector<8xf32>
    %17 = vector.multi_reduction <add>, %16, %cst_11 [1] : vector<8x8xf32> to vector<8xf32>
    %18 = vector.shape_cast %17 : vector<8xf32> to vector<8x1xf32>
    %19 = math.log %18 : vector<8x1xf32>
    %20 = vector.broadcast %19 : vector<8x1xf32> to vector<8x8xf32>
    %21 = arith.subf %15, %20 : vector<8x8xf32>
    %c0_12 = arith.constant 0 : index
    %c0_13 = arith.constant 0 : index
    %22 = vector.load %arg5[%c0_12, %c0_13] : memref<8x8xf32, #tpu.memory_space<vmem>>, vector<8x8xf32>
    tpu.vector_store %arg5[%c0_12, %c0_13], %21 {strides = array<i32>} : memref<8x8xf32, #tpu.memory_space<vmem>>, vector<8x8xf32>,
    %c0_14 = arith.constant 0 : index
    %c0_15 = arith.constant 0 : index
    %23 = vector.load %arg6[%c0_14, %c0_15] : memref<8x32xf32, #tpu.memory_space<vmem>>, vector<8x32xf32>
    tpu.vector_store %arg6[%c0_14, %c0_15], %10 {strides = array<i32>} : memref<8x32xf32, #tpu.memory_space<vmem>>, vector<8x32xf32>,
    return
  }
}

</mosaic_0001>

<llo_original>
// kernel: rnn_forward.1
$region0: #{rnn_forward.1}
  #allocation0 [shape = 'u32[]', space=smem, size = 0x4, offset = 0x4, fixed_abs, tag = 'smem constant byte address 0x4 - core index']
  #allocation1 [shape = 'u32[72,128]{1,0:T(1,128)}', space=vmem, size = 0x9000, scoped, tag = 'internal scratch']
  %s0 = inlined_call_operand.hbm [shape: f32[8,16], index: 0, kind: input, shape index: {}]
  %s1 = inlined_call_operand.hbm [shape: f32[8,32], index: 1, kind: input, shape index: {}]
  %s2 = inlined_call_operand.hbm [shape: f32[16,40], index: 2, kind: input, shape index: {}]
  %s3 = inlined_call_operand.hbm [shape: f32[32,40], index: 3, kind: input, shape index: {}]
  %s4 = inlined_call_operand.vmem [shape: f32[1,40], index: 4, kind: input, shape index: {}]
  %s5 = inlined_call_operand.hbm [shape: f32[8,8], index: 5, kind: output, shape index: {0}]
  %s6 = inlined_call_operand.hbm [shape: f32[8,32], index: 6, kind: output, shape index: {1}]
  %7 = xla_tuple %s5, %s6
  %s8 = sld [smem:[#allocation0]]
  $region54: #{rnn_forward.1} parent=0
    _
  %s10 = ssub.s32 1, %s8
  %s11 = scalar_select 0, %s10, %s8
  $region1: #{rnn_forward.1} parent=0
    #allocation2 [shape = 'u8[4096]{0}', space=vmem, size = 0x1000, scoped, tag = 'input window, operand 0, single buffered']
    #allocation3 [shape = 's32[1]{0}', space=sflag, size = 0x4, scoped, tag = 'scoped memory for rnn_forward.1']
    #allocation4 [shape = 's32[1]{0}', space=sflag, size = 0x4, scoped, tag = 'scoped memory for rnn_forward.1']
    #allocation5 [shape = 'u8[4096]{0}', space=vmem, size = 0x1000, scoped, tag = 'input window, operand 1, single buffered']
    #allocation6 [shape = 's32[1]{0}', space=sflag, size = 0x4, scoped, tag = 'scoped memory for rnn_forward.1']
    #allocation7 [shape = 'u8[8192]{0}', space=vmem, size = 0x2000, scoped, tag = 'input window, operand 2, single buffered']
    #allocation8 [shape = 'u8[16384]{0}', space=vmem, size = 0x4000, scoped, tag = 'input window, operand 3, single buffered']
    #allocation9 [shape = 's32[1]{0}', space=sflag, size = 0x4, scoped, tag = 'scoped memory for rnn_forward.1']
    #allocation10 [shape = 'u8[4096]{0}', space=vmem, size = 0x1000, scoped, tag = 'output window, operand 0, single buffered']
    #allocation11 [shape = 'u8[4096]{0}', space=vmem, size = 0x1000, scoped, tag = 'output window, operand 1, single buffered']
    #allocation12 [shape = 's32[1]{0}', space=sflag, size = 0x4, scoped, tag = 'scoped memory for rnn_forward.1']
    %12 = vsyncpa [#allocation3], 0
    %13 = vsyncpa [#allocation6], 0
    %14 = vsyncpa [#allocation9], 0
    %15 = vsyncpa [#allocation4], 0
    %16 = vsyncpa [#allocation12], 0
    // Predicated region
    $region2: #{rnn_forward.1} parent=1 // pred_check
      _
    $region3: #{rnn_forward.1} parent=1 // pred_check_branch
      %18 = sbr.rel (0) target = $region5
    $region4: #{rnn_forward.1} parent=1 // pred_region
      %20 = vsyncadd [#allocation3], 0
      %s22 = sshll.u32 %s0, 4
      %s23 = int_to_ptr.hbm [resolvable:$true] %s22
      %s24 = sshll.u32 [#allocation2], 4
      %s25 = int_to_ptr.vmem [resolvable:$true] %s24
      %27 = dma.hbm_to_vmem [thread:$0]  %s23, 128, %s25, [#allocation3]
    $region5: #{rnn_forward.1} parent=1 // pred_fallthru
      _
    // Predicated region
    $region6: #{rnn_forward.1} parent=1 // pred_check
      _
    $region7: #{rnn_forward.1} parent=1 // pred_check_branch
      %29 = sbr.rel (0) target = $region9
    $region8: #{rnn_forward.1} parent=1 // pred_region
      %31 = vsyncadd [#allocation6], 0
      %s33 = sshll.u32 %s1, 4
      %s34 = int_to_ptr.hbm [resolvable:$true] %s33
      %s35 = sshll.u32 [#allocation5], 4
      %s36 = int_to_ptr.vmem [resolvable:$true] %s35
      %38 = dma.hbm_to_vmem [thread:$0]  %s34, 128, %s36, [#allocation6]
    $region9: #{rnn_forward.1} parent=1 // pred_fallthru
      _
    // Predicated region
    $region10: #{rnn_forward.1} parent=1 // pred_check
      _
    $region11: #{rnn_forward.1} parent=1 // pred_check_branch
      %40 = sbr.rel (0) target = $region13
    $region12: #{rnn_forward.1} parent=1 // pred_region
      %42 = vsyncadd [#allocation6], 0
      %s43 = sshll.u32 %s2, 4
      %s44 = int_to_ptr.hbm [resolvable:$true] %s43
      %s45 = sshll.u32 [#allocation7], 4
      %s46 = int_to_ptr.vmem [resolvable:$true] %s45
      %51 = dma.hbm_to_vmem [thread:$0]  %s44, 256, %s46, [#allocation6], 128, 128, 8
    $region13: #{rnn_forward.1} parent=1 // pred_fallthru
      _
    // Predicated region
    $region14: #{rnn_forward.1} parent=1 // pred_check
      _
    $region15: #{rnn_forward.1} parent=1 // pred_check_branch
      %53 = sbr.rel (0) target = $region17
    $region16: #{rnn_forward.1} parent=1 // pred_region
      %55 = vsyncadd [#allocation9], 0
      %s56 = sshll.u32 %s3, 4
      %s57 = int_to_ptr.hbm [resolvable:$true] %s56
      %s58 = sshll.u32 [#allocation8], 4
      %s59 = int_to_ptr.vmem [resolvable:$true] %s58
      %64 = dma.hbm_to_vmem [thread:$0]  %s57, 512, %s59, [#allocation9], 128, 128, 8
    $region17: #{rnn_forward.1} parent=1 // pred_fallthru
      _
    // Predicated region
    $region18: #{rnn_forward.1} parent=1 // pred_check
      _
    $region19: #{rnn_forward.1} parent=1 // pred_check_branch
      %66 = sbr.rel (0) target = $region21
    $region20: #{rnn_forward.1} parent=1 // pred_region
      _
    $region21: #{rnn_forward.1} parent=1 // pred_fallthru
      _
    // Predicated region
    $region22: #{rnn_forward.1} parent=1 // pred_check
      _
    $region23: #{rnn_forward.1} parent=1 // pred_check_branch
      %68 = sbr.rel (0) target = $region25
    $region24: #{rnn_forward.1} parent=1 // pred_region
      %70 = dma.done [#allocation3], 128
    $region25: #{rnn_forward.1} parent=1 // pred_fallthru
      _
    // Predicated region
    $region26: #{rnn_forward.1} parent=1 // pred_check
      _
    $region27: #{rnn_forward.1} parent=1 // pred_check_branch
      %72 = sbr.rel (0) target = $region29
    $region28: #{rnn_forward.1} parent=1 // pred_region
      %74 = dma.done [#allocation6], 128
    $region29: #{rnn_forward.1} parent=1 // pred_fallthru
      _
    // Predicated region
    $region30: #{rnn_forward.1} parent=1 // pred_check
      _
    $region31: #{rnn_forward.1} parent=1 // pred_check_branch
      %76 = sbr.rel (0) target = $region33
    $region32: #{rnn_forward.1} parent=1 // pred_region
      %78 = dma.done [#allocation6], 256
    $region33: #{rnn_forward.1} parent=1 // pred_fallthru
      _
    // Predicated region
    $region34: #{rnn_forward.1} parent=1 // pred_check
      _
    $region35: #{rnn_forward.1} parent=1 // pred_check_branch
      %80 = sbr.rel (0) target = $region37
    $region36: #{rnn_forward.1} parent=1 // pred_region
      %82 = dma.done [#allocation9], 512
    $region37: #{rnn_forward.1} parent=1 // pred_fallthru
      _
    %v83 = vld [vmem:[#allocation2] sm:$0xff]
    %v84 = vld [vmem:[#allocation5] sm:$0xff]
    %v85 = vld [vmem:[#allocation7] sm:$0xff]
    %v86 = vld [vmem:[#allocation7 + $0x8] sm:$0xff]
    %v87 = vld [vmem:[#allocation8] sm:$0xff]
    %v88 = vld [vmem:[#allocation8 + $0x8] sm:$0xff]
    %v89 = vld [vmem:[#allocation8 + $0x10] sm:$0xff]
    %v90 = vld [vmem:[#allocation8 + $0x18] sm:$0xff]
    %vm91 = vcmask 261120
    %v93 = vsel %vm91, %v84, 0
    %95 = vmatpush.msra.mxu0 0.0
    %96 = vmatpush.msra.mxu0 0.0
    %97 = vmatpush.msra.mxu0 0.0
    %98 = vmatpush.msra.mxu0 0.0
    %99 = vmatpush.msra.mxu0 0.0
    %100 = vmatpush.msra.mxu0 0.0
    %101 = vmatpush.msra.mxu0 0.0
    %102 = vmatpush.msra.mxu0 0.0
    %103 = vmatpush.msra.mxu0 0.0
    %104 = vmatpush.msra.mxu0 0.0
    %105 = vmatpush.msra.mxu0 0.0
    %106 = vmatpush.msra.mxu0 0.0
    %107 = vmatpush.msra.mxu0 %v90
    %108 = vmatpush.msra.mxu0 %v89
    %109 = vmatpush.msra.mxu0 %v88
    %110 = vmatpush.msra.mxu0 %v87
    %111 = vmatmul.f32.gmra.mxu0 %v93
    %v112 = vpop.f32.mrf.mxu0
    %v113 = vadd.f32 0.0, %v112
    %114 = vdwg.mxu0
    %vm115 = vcmask 130048
    %v117 = vsel %vm115, %v83, 0
    %119 = vmatpush.msra.mxu0 0.0
    %120 = vmatpush.msra.mxu0 0.0
    %121 = vmatpush.msra.mxu0 0.0
    %122 = vmatpush.msra.mxu0 0.0
    %123 = vmatpush.msra.mxu0 0.0
    %124 = vmatpush.msra.mxu0 0.0
    %125 = vmatpush.msra.mxu0 0.0
    %126 = vmatpush.msra.mxu0 0.0
    %127 = vmatpush.msra.mxu0 0.0
    %128 = vmatpush.msra.mxu0 0.0
    %129 = vmatpush.msra.mxu0 0.0
    %130 = vmatpush.msra.mxu0 0.0
    %131 = vmatpush.msra.mxu0 0.0
    %132 = vmatpush.msra.mxu0 0.0
    %133 = vmatpush.msra.mxu0 %v86
    %134 = vmatpush.msra.mxu0 %v85
    %135 = vmatmul.f32.gmra.mxu0 %v117
    %v136 = vpop.f32.mrf.mxu0
    %v137 = vadd.f32 %v113, %v136
    %138 = vdwg.mxu0
    %v139 = vld [vmem:[%s4] sm:$0x1]
    %v141 = vperm.slane %v139, 0
    %v143 = vadd.f32 %v137, %v141
    %vm144 = vcmask 326912
    %v145 = vsel %vm144, %v143, -inf
    %146 = vmax.xlane.f32.xlu0 %v145
    %v147 = vpop.xlane.xlu0 %146
    %v148 = vsub.f32 %v143, %v147
    %v149 = vmul.f32 %v148, 1.442695
    %v150 = vpow.pop %v149
    %152 = vrot.lane.b32.xlu0 %v150, 96
    %v153 = vpop.permute.xlu0 %152
    %vm155 = vcmask 64512
    %v156 = vsel %vm155, %v153, 0.0
    %157 = vadd.xlane.f32.xlu0 %v156
    %v158 = vpop.xlane.xlu0 %157
    %v159 = vlog2.pop %v158
    %v160 = vmul.f32 %v159, 0.6931472
    %v161 = vsub.f32 %v148, %v160
    %163 = vrot.lane.b32.xlu0 %v161, 96
    %v164 = vpop.permute.xlu0 %163
    %166 = vst.msk [vmem:[#allocation10] sm:$0xff] %vm155, %v164
    %167 = vst.msk [vmem:[#allocation11] sm:$0xff] %vm91, %v143
    // Predicated region
    $region38: #{rnn_forward.1} parent=1 // pred_check
      _
    $region39: #{rnn_forward.1} parent=1 // pred_check_branch
      %169 = sbr.rel (0) target = $region41
    $region40: #{rnn_forward.1} parent=1 // pred_region
      %171 = vsyncadd [#allocation4], 0
      %s173 = sshll.u32 [#allocation10], 4
      %s174 = int_to_ptr.vmem [resolvable:$true] %s173
      %s175 = sshll.u32 %s5, 4
      %s176 = int_to_ptr.hbm [resolvable:$true] %s175
      %178 = dma.vmem_to_hbm [thread:$0]  %s174, 128, %s176, [#allocation4]
    $region41: #{rnn_forward.1} parent=1 // pred_fallthru
      _
    // Predicated region
    $region42: #{rnn_forward.1} parent=1 // pred_check
      _
    $region43: #{rnn_forward.1} parent=1 // pred_check_branch
      %180 = sbr.rel (0) target = $region45
    $region44: #{rnn_forward.1} parent=1 // pred_region
      %182 = vsyncadd [#allocation12], 0
      %s184 = sshll.u32 [#allocation11], 4
      %s185 = int_to_ptr.vmem [resolvable:$true] %s184
      %s186 = sshll.u32 %s6, 4
      %s187 = int_to_ptr.hbm [resolvable:$true] %s186
      %189 = dma.vmem_to_hbm [thread:$0]  %s185, 128, %s187, [#allocation12]
    $region45: #{rnn_forward.1} parent=1 // pred_fallthru
      _
    // Predicated region
    $region46: #{rnn_forward.1} parent=1 // pred_check
      _
    $region47: #{rnn_forward.1} parent=1 // pred_check_branch
      %191 = sbr.rel (0) target = $region49
    $region48: #{rnn_forward.1} parent=1 // pred_region
      %193 = dma.done [#allocation4], 128
    $region49: #{rnn_forward.1} parent=1 // pred_fallthru
      _
    // Predicated region
    $region50: #{rnn_forward.1} parent=1 // pred_check
      _
    $region51: #{rnn_forward.1} parent=1 // pred_check_branch
      %195 = sbr.rel (0) target = $region53
    $region52: #{rnn_forward.1} parent=1 // pred_region
      %197 = dma.done [#allocation12], 128
    $region53: #{rnn_forward.1} parent=1 // pred_fallthru
      _
    %198 = vsyncpa [#allocation3], 1
    %199 = vsyncpa [#allocation6], 1
    %200 = vsyncpa [#allocation9], 1
    %201 = vsyncpa [#allocation4], 1
    %202 = vsyncpa [#allocation12], 1

</llo_original>
